<compile_context>
chip_gen: v7x
topology: tpu7x:2x2x1
jax: 0.10.0
libtpu: 0.0.40
codegen_flags: <defaults>
</compile_context>

<pallas_src>
from functools import partial

import jax
import jax.numpy as jnp
from jax.experimental import pallas as pl
from jax.experimental.pallas import tpu as pltpu


# ----------------------------- fused Pallas kernel ---------------------------

def _fused_attention_kernel(
    x_ref, ctx_ref, wq_ref, wkv_ref, wout_ref, bout_ref, o_ref,
    *, heads, dim_head, scale,
):
    inner = heads * dim_head
    x = x_ref[0]      # (n, query_dim)
    ctx = ctx_ref[0]  # (m, context_dim)

    # Projections on the MXU with f32 accumulation.
    q = jnp.dot(x, wq_ref[...], preferred_element_type=jnp.float32)      # (n, inner)
    kv = jnp.dot(ctx, wkv_ref[...], preferred_element_type=jnp.float32)  # (m, 2*inner)

    # Fold the softmax scale into q once (cheaper than scaling sim per head).
    q = q * jnp.float32(scale)

    # Per-head attention, statically unrolled (heads is a small compile-time
    # constant); head split/merge is done with lane slices, never via HBM
    # transposes.
    head_outs = []
    for h in range(heads):
        lo = h * dim_head
        qh = q[:, lo:lo + dim_head]                       # (n, d)
        kh = kv[:, lo:lo + dim_head]                      # (m, d)
        vh = kv[:, inner + lo:inner + lo + dim_head]      # (m, d)

        # Contract the last dims directly -- no explicit transpose of k.
        sim = jax.lax.dot_general(
            qh, kh, (((1,), (1,)), ((), ())),
            preferred_element_type=jnp.float32,
        )                                                 # (n, m)

        # Numerically-stable softmax over the last axis.
        sim = sim - jnp.max(sim, axis=-1, keepdims=True)
        p = jnp.exp(sim)
        denom = jnp.sum(p, axis=-1, keepdims=True)
        r = pl.reciprocal(denom, approx=True)             # EUP slot
        r = r * (2.0 - denom * r)                         # one Newton step -> f32 accuracy
        p = p * r
        # TODO(synk): mask (masked_fill) and non-zero dropout paths are not implemented.

        head_outs.append(
            jnp.dot(p, vh, preferred_element_type=jnp.float32)  # (n, d)
        )

    # Merge heads: lane-dense (n, inner) activation, stays on-chip.
    o = jnp.concatenate(head_outs, axis=-1)

    # Output projection + bias.
    out = jnp.dot(o, wout_ref[...], preferred_element_type=jnp.float32) + bout_ref[...]
    o_ref[0] = out.astype(o_ref.dtype)


# ----------------------------- wrapper ---------------------------------------

def attention_forward(x, params, *, heads, dim_head, context=None):
    """Fused Perceiver attention forward. x: (b, n, query_dim)."""
    b, n, qd = x.shape
    ctx = x if context is None else context
    _, m, cd = ctx.shape
    inner = heads * dim_head
    scale = dim_head ** (-0.5)
    bias2d = params["b_out"].reshape(1, qd)

    kernel = partial(
        _fused_attention_kernel, heads=heads, dim_head=dim_head, scale=scale
    )
    return pl.pallas_call(
        kernel,
        out_shape=jax.ShapeDtypeStruct((b, n, qd), x.dtype),
        grid=(b,),
        in_specs=[
            pl.BlockSpec((1, n, qd), lambda i: (i, 0, 0)),        # x (per batch)
            pl.BlockSpec((1, m, cd), lambda i: (i, 0, 0)),        # context (per batch)
            pl.BlockSpec((qd, inner), lambda i: (0, 0)),          # w_q (resident)
            pl.BlockSpec((cd, 2 * inner), lambda i: (0, 0)),      # w_kv (resident)
            pl.BlockSpec((inner, qd), lambda i: (0, 0)),          # w_out (resident)
            pl.BlockSpec((1, qd), lambda i: (0, 0)),              # b_out (resident)
        ],
        out_specs=pl.BlockSpec((1, n, qd), lambda i: (i, 0, 0)),
        compiler_params=pltpu.CompilerParams(
            dimension_semantics=("parallel",),   # batch axis; shards across v7x's 2 TCs
            vmem_limit_bytes=32 * 1024 * 1024,   # fits v7x's 64 MiB VMEM budget
        ),
    )(x, ctx, params["w_q"], params["w_kv"], params["w_out"], bias2d)


# ----------------------------- reference (plain JAX) --------------------------

def reference_forward(x, params, *, heads, dim_head, context=None):
    ctx = x if context is None else context
    inner = heads * dim_head
    b, n, _ = x.shape
    q = x @ params["w_q"]
    kv = ctx @ params["w_kv"]
    k, v = kv[..., :inner], kv[..., inner:]

    def sh(t):
        bb, nn, _ = t.shape
        return (
            t.reshape(bb, nn, heads, dim_head)
            .transpose(0, 2, 1, 3)
            .reshape(bb * heads, nn, dim_head)
        )

    qh, kh, vh = map(sh, (q, k, v))
    sim = jnp.einsum("bid,bjd->bij", qh, kh) * dim_head ** (-0.5)
    attn = jax.nn.softmax(sim, axis=-1)
    oh = jnp.einsum("bij,bjd->bid", attn, vh)
    o = oh.reshape(b, heads, n, dim_head).transpose(0, 2, 1, 3).reshape(b, n, inner)
    return o @ params["w_out"] + params["b_out"]


# ----------------------------- main -------------------------------------------

if __name__ == "__main__":
    query_dim = 32
    heads = 4
    dim_head = 16
    inner = heads * dim_head
    b, n = 2, 8

    key = jax.random.PRNGKey(0)
    k1, k2, k3, k4, kx = jax.random.split(key, 5)
    params = {
        # stored pre-transposed relative to torch's nn.Linear.weight: (in, out)
        "w_q": 0.05 * jax.random.normal(k1, (query_dim, inner), jnp.float32),
        "w_kv": 0.05 * jax.random.normal(k2, (query_dim, 2 * inner), jnp.float32),
        "w_out": 0.05 * jax.random.normal(k3, (inner, query_dim), jnp.float32),
        "b_out": 0.05 * jax.random.normal(k4, (query_dim,), jnp.float32),
    }
    x = jax.random.normal(kx, (b, n, query_dim), jnp.float32)

    out = attention_forward(x, params, heads=heads, dim_head=dim_head)
    out = jax.block_until_ready(out)

    ref = reference_forward(x, params, heads=heads, dim_head=dim_head)
    assert out.shape == (b, n, query_dim), out.shape
    assert jnp.allclose(out, ref, atol=1e-4, rtol=1e-4), float(
        jnp.max(jnp.abs(out - ref))
    )
    print("KERNEL_OK")
</pallas_src>

<mosaic_0001>
module attributes {stable_mosaic.version = 11 : i64} {
  func.func @_fused_attention_kernel(%arg0: i32, %arg1: memref<1x8x32xf32, #tpu.memory_space<vmem>>, %arg2: memref<1x8x32xf32, #tpu.memory_space<vmem>>, %arg3: memref<32x64xf32, #tpu.memory_space<vmem>>, %arg4: memref<32x128xf32, #tpu.memory_space<vmem>>, %arg5: memref<64x32xf32, #tpu.memory_space<vmem>>, %arg6: memref<1x32xf32, #tpu.memory_space<vmem>>, %arg7: memref<1x8x32xf32, #tpu.memory_space<vmem>>) attributes {dimension_semantics = [#tpu.dimension_semantics<parallel>], iteration_bounds = array<i64: 2>, scalar_prefetch = 0 : i64, scratch_operands = 0 : i64, tpu.core_type = #tpu.core_type<tc>, window_params = [{transform_indices = @transform_0, window_bounds = array<i64: 1, 8, 32>}, {transform_indices = @transform_1, window_bounds = array<i64: 1, 8, 32>}, {pipeline_mode = #tpu.pipeline_mode<synchronous>, transform_indices = @transform_2, window_bounds = array<i64: 32, 64>}, {pipeline_mode = #tpu.pipeline_mode<synchronous>, transform_indices = @transform_3, window_bounds = array<i64: 32, 128>}, {pipeline_mode = #tpu.pipeline_mode<synchronous>, transform_indices = @transform_4, window_bounds = array<i64: 64, 32>}, {pipeline_mode = #tpu.pipeline_mode<synchronous>, transform_indices = @transform_5, window_bounds = array<i64: 1, 32>}, {transform_indices = @transform_6, window_bounds = array<i64: 1, 8, 32>}]} {
    %c0 = arith.constant 0 : index
    %c0_0 = arith.constant 0 : index
    %c0_1 = arith.constant 0 : index
    %0 = vector.load %arg1[%c0, %c0_0, %c0_1] : memref<1x8x32xf32, #tpu.memory_space<vmem>>, vector<1x8x32xf32>
    %1 = vector.shape_cast %0 : vector<1x8x32xf32> to vector<8x32xf32>
    %c0_2 = arith.constant 0 : index
    %c0_3 = arith.constant 0 : index
    %c0_4 = arith.constant 0 : index
    %2 = vector.load %arg2[%c0_2, %c0_3, %c0_4] : memref<1x8x32xf32, #tpu.memory_space<vmem>>, vector<1x8x32xf32>
    %3 = vector.shape_cast %2 : vector<1x8x32xf32> to vector<8x32xf32>
    %c0_5 = arith.constant 0 : index
    %c0_6 = arith.constant 0 : index
    %4 = vector.load %arg3[%c0_5, %c0_6] : memref<32x64xf32, #tpu.memory_space<vmem>>, vector<32x64xf32>
    %cst = arith.constant dense<0.000000e+00> : vector<8x64xf32>
    %5 = tpu.matmul %1, %4, %cst {dimension_numbers = #tpu.dot_dimension_numbers<[1], [0], [0], [1], [0, 0, 1, 1], [], []>} : vector<8x32xf32>, vector<32x64xf32>, vector<8x64xf32> -> vector<8x64xf32>
    %c0_7 = arith.constant 0 : index
    %c0_8 = arith.constant 0 : index
    %6 = vector.load %arg4[%c0_7, %c0_8] : memref<32x128xf32, #tpu.memory_space<vmem>>, vector<32x128xf32>
    %cst_9 = arith.constant dense<0.000000e+00> : vector<8x128xf32>
    %7 = tpu.matmul %3, %6, %cst_9 {dimension_numbers = #tpu.dot_dimension_numbers<[1], [0], [0], [1], [0, 0, 1, 1], [], []>} : vector<8x32xf32>, vector<32x128xf32>, vector<8x128xf32> -> vector<8x128xf32>
    %cst_10 = arith.constant 2.500000e-01 : f32
    %8 = vector.broadcast %cst_10 : f32 to vector<8x64xf32>
    %9 = arith.mulf %5, %8 : vector<8x64xf32>
    %10 = vector.extract_strided_slice %9 {offsets = [0, 0], sizes = [8, 16], strides = [1, 1]} : vector<8x64xf32> to vector<8x16xf32>
    %11 = vector.extract_strided_slice %7 {offsets = [0, 0], sizes = [8, 16], strides = [1, 1]} : vector<8x128xf32> to vector<8x16xf32>
    %12 = vector.extract_strided_slice %7 {offsets = [0, 64], sizes = [8, 16], strides = [1, 1]} : vector<8x128xf32> to vector<8x16xf32>
    %cst_11 = arith.constant dense<0.000000e+00> : vector<8x8xf32>
    %13 = tpu.matmul %10, %11, %cst_11 {dimension_numbers = #tpu.dot_dimension_numbers<[1], [1], [0], [0], [0, 0, 1, 0], [], []>} : vector<8x16xf32>, vector<8x16xf32>, vector<8x8xf32> -> vector<8x8xf32>
    %cst_12 = arith.constant dense<0xFF800000> : vector<8xf32>
    %14 = vector.multi_reduction <maximumf>, %13, %cst_12 [1] : vector<8x8xf32> to vector<8xf32>
    %15 = vector.shape_cast %14 : vector<8xf32> to vector<8x1xf32>
    %16 = vector.broadcast %15 : vector<8x1xf32> to vector<8x8xf32>
    %17 = arith.subf %13, %16 : vector<8x8xf32>
    %18 = math.exp %17 : vector<8x8xf32>
    %cst_13 = arith.constant dense<0.000000e+00> : vector<8xf32>
    %19 = vector.multi_reduction <add>, %18, %cst_13 [1] : vector<8x8xf32> to vector<8xf32>
    %20 = vector.shape_cast %19 : vector<8xf32> to vector<8x1xf32>
    %21 = tpu.reciprocal %20 {approx = true} : vector<8x1xf32> -> vector<8x1xf32>
    %22 = arith.mulf %20, %21 : vector<8x1xf32>
    %cst_14 = arith.constant 2.000000e+00 : f32
    %23 = vector.broadcast %cst_14 : f32 to vector<8x1xf32>
    %24 = arith.subf %23, %22 : vector<8x1xf32>
    %25 = arith.mulf %21, %24 : vector<8x1xf32>
    %26 = vector.broadcast %25 : vector<8x1xf32> to vector<8x8xf32>
    %27 = arith.mulf %18, %26 : vector<8x8xf32>
    %cst_15 = arith.constant dense<0.000000e+00> : vector<8x16xf32>
    %28 = tpu.matmul %27, %12, %cst_15 {dimension_numbers = #tpu.dot_dimension_numbers<[1], [0], [0], [1], [0, 0, 1, 1], [], []>} : vector<8x8xf32>, vector<8x16xf32>, vector<8x16xf32> -> vector<8x16xf32>
    %29 = vector.extract_strided_slice %9 {offsets = [0, 16], sizes = [8, 16], strides = [1, 1]} : vector<8x64xf32> to vector<8x16xf32>
    %30 = vector.extract_strided_slice %7 {offsets = [0, 16], sizes = [8, 16], strides = [1, 1]} : vector<8x128xf32> to vector<8x16xf32>
    %31 = vector.extract_strided_slice %7 {offsets = [0, 80], sizes = [8, 16], strides = [1, 1]} : vector<8x128xf32> to vector<8x16xf32>
    %cst_16 = arith.constant dense<0.000000e+00> : vector<8x8xf32>
    %32 = tpu.matmul %29, %30, %cst_16 {dimension_numbers = #tpu.dot_dimension_numbers<[1], [1], [0], [0], [0, 0, 1, 0], [], []>} : vector<8x16xf32>, vector<8x16xf32>, vector<8x8xf32> -> vector<8x8xf32>
    %cst_17 = arith.constant dense<0xFF800000> : vector<8xf32>
    %33 = vector.multi_reduction <maximumf>, %32, %cst_17 [1] : vector<8x8xf32> to vector<8xf32>
    %34 = vector.shape_cast %33 : vector<8xf32> to vector<8x1xf32>
    %35 = vector.broadcast %34 : vector<8x1xf32> to vector<8x8xf32>
    %36 = arith.subf %32, %35 : vector<8x8xf32>
    %37 = math.exp %36 : vector<8x8xf32>
    %cst_18 = arith.constant dense<0.000000e+00> : vector<8xf32>
    %38 = vector.multi_reduction <add>, %37, %cst_18 [1] : vector<8x8xf32> to vector<8xf32>
    %39 = vector.shape_cast %38 : vector<8xf32> to vector<8x1xf32>
    %40 = tpu.reciprocal %39 {approx = true} : vector<8x1xf32> -> vector<8x1xf32>
    %41 = arith.mulf %39, %40 : vector<8x1xf32>
    %cst_19 = arith.constant 2.000000e+00 : f32
    %42 = vector.broadcast %cst_19 : f32 to vector<8x1xf32>
    %43 = arith.subf %42, %41 : vector<8x1xf32>
    %44 = arith.mulf %40, %43 : vector<8x1xf32>
    %45 = vector.broadcast %44 : vector<8x1xf32> to vector<8x8xf32>
    %46 = arith.mulf %37, %45 : vector<8x8xf32>
    %cst_20 = arith.constant dense<0.000000e+00> : vector<8x16xf32>
    %47 = tpu.matmul %46, %31, %cst_20 {dimension_numbers = #tpu.dot_dimension_numbers<[1], [0], [0], [1], [0, 0, 1, 1], [], []>} : vector<8x8xf32>, vector<8x16xf32>, vector<8x16xf32> -> vector<8x16xf32>
    %48 = vector.extract_strided_slice %9 {offsets = [0, 32], sizes = [8, 16], strides = [1, 1]} : vector<8x64xf32> to vector<8x16xf32>
    %49 = vector.extract_strided_slice %7 {offsets = [0, 32], sizes = [8, 16], strides = [1, 1]} : vector<8x128xf32> to vector<8x16xf32>
    %50 = vector.extract_strided_slice %7 {offsets = [0, 96], sizes = [8, 16], strides = [1, 1]} : vector<8x128xf32> to vector<8x16xf32>
    %cst_21 = arith.constant dense<0.000000e+00> : vector<8x8xf32>
    %51 = tpu.matmul %48, %49, %cst_21 {dimension_numbers = #tpu.dot_dimension_numbers<[1], [1], [0], [0], [0, 0, 1, 0], [], []>} : vector<8x16xf32>, vector<8x16xf32>, vector<8x8xf32> -> vector<8x8xf32>
    %cst_22 = arith.constant dense<0xFF800000> : vector<8xf32>
    %52 = vector.multi_reduction <maximumf>, %51, %cst_22 [1] : vector<8x8xf32> to vector<8xf32>
    %53 = vector.shape_cast %52 : vector<8xf32> to vector<8x1xf32>
    %54 = vector.broadcast %53 : vector<8x1xf32> to vector<8x8xf32>
    %55 = arith.subf %51, %54 : vector<8x8xf32>
    %56 = math.exp %55 : vector<8x8xf32>
    %cst_23 = arith.constant dense<0.000000e+00> : vector<8xf32>
    %57 = vector.multi_reduction <add>, %56, %cst_23 [1] : vector<8x8xf32> to vector<8xf32>
    %58 = vector.shape_cast %57 : vector<8xf32> to vector<8x1xf32>
    %59 = tpu.reciprocal %58 {approx = true} : vector<8x1xf32> -> vector<8x1xf32>
    %60 = arith.mulf %58, %59 : vector<8x1xf32>
    %cst_24 = arith.constant 2.000000e+00 : f32
    %61 = vector.broadcast %cst_24 : f32 to vector<8x1xf32>
    %62 = arith.subf %61, %60 : vector<8x1xf32>
    %63 = arith.mulf %59, %62 : vector<8x1xf32>
    %64 = vector.broadcast %63 : vector<8x1xf32> to vector<8x8xf32>
    %65 = arith.mulf %56, %64 : vector<8x8xf32>
    %cst_25 = arith.constant dense<0.000000e+00> : vector<8x16xf32>
    %66 = tpu.matmul %65, %50, %cst_25 {dimension_numbers = #tpu.dot_dimension_numbers<[1], [0], [0], [1], [0, 0, 1, 1], [], []>} : vector<8x8xf32>, vector<8x16xf32>, vector<8x16xf32> -> vector<8x16xf32>
    %67 = vector.extract_strided_slice %9 {offsets = [0, 48], sizes = [8, 16], strides = [1, 1]} : vector<8x64xf32> to vector<8x16xf32>
    %68 = vector.extract_strided_slice %7 {offsets = [0, 48], sizes = [8, 16], strides = [1, 1]} : vector<8x128xf32> to vector<8x16xf32>
    %69 = vector.extract_strided_slice %7 {offsets = [0, 112], sizes = [8, 16], strides = [1, 1]} : vector<8x128xf32> to vector<8x16xf32>
    %cst_26 = arith.constant dense<0.000000e+00> : vector<8x8xf32>
    %70 = tpu.matmul %67, %68, %cst_26 {dimension_numbers = #tpu.dot_dimension_numbers<[1], [1], [0], [0], [0, 0, 1, 0], [], []>} : vector<8x16xf32>, vector<8x16xf32>, vector<8x8xf32> -> vector<8x8xf32>
    %cst_27 = arith.constant dense<0xFF800000> : vector<8xf32>
    %71 = vector.multi_reduction <maximumf>, %70, %cst_27 [1] : vector<8x8xf32> to vector<8xf32>
    %72 = vector.shape_cast %71 : vector<8xf32> to vector<8x1xf32>
    %73 = vector.broadcast %72 : vector<8x1xf32> to vector<8x8xf32>
    %74 = arith.subf %70, %73 : vector<8x8xf32>
    %75 = math.exp %74 : vector<8x8xf32>
    %cst_28 = arith.constant dense<0.000000e+00> : vector<8xf32>
    %76 = vector.multi_reduction <add>, %75, %cst_28 [1] : vector<8x8xf32> to vector<8xf32>
    %77 = vector.shape_cast %76 : vector<8xf32> to vector<8x1xf32>
    %78 = tpu.reciprocal %77 {approx = true} : vector<8x1xf32> -> vector<8x1xf32>
    %79 = arith.mulf %77, %78 : vector<8x1xf32>
    %cst_29 = arith.constant 2.000000e+00 : f32
    %80 = vector.broadcast %cst_29 : f32 to vector<8x1xf32>
    %81 = arith.subf %80, %79 : vector<8x1xf32>
    %82 = arith.mulf %78, %81 : vector<8x1xf32>
    %83 = vector.broadcast %82 : vector<8x1xf32> to vector<8x8xf32>
    %84 = arith.mulf %75, %83 : vector<8x8xf32>
    %cst_30 = arith.constant dense<0.000000e+00> : vector<8x16xf32>
    %85 = tpu.matmul %84, %69, %cst_30 {dimension_numbers = #tpu.dot_dimension_numbers<[1], [0], [0], [1], [0, 0, 1, 1], [], []>} : vector<8x8xf32>, vector<8x16xf32>, vector<8x16xf32> -> vector<8x16xf32>
    %86 = tpu.concatenate %28, %47, %66, %85 in 1 : vector<8x16xf32>, vector<8x16xf32>, vector<8x16xf32>, vector<8x16xf32> -> vector<8x64xf32>
    %c0_31 = arith.constant 0 : index
    %c0_32 = arith.constant 0 : index
    %87 = vector.load %arg5[%c0_31, %c0_32] : memref<64x32xf32, #tpu.memory_space<vmem>>, vector<64x32xf32>
    %cst_33 = arith.constant dense<0.000000e+00> : vector<8x32xf32>
    %88 = tpu.matmul %86, %87, %cst_33 {dimension_numbers = #tpu.dot_dimension_numbers<[1], [0], [0], [1], [0, 0, 1, 1], [], []>} : vector<8x64xf32>, vector<64x32xf32>, vector<8x32xf32> -> vector<8x32xf32>
    %c0_34 = arith.constant 0 : index
    %c0_35 = arith.constant 0 : index
    %89 = vector.load %arg6[%c0_34, %c0_35] : memref<1x32xf32, #tpu.memory_space<vmem>>, vector<1x32xf32>
    %90 = vector.broadcast %89 : vector<1x32xf32> to vector<8x32xf32>
    %91 = arith.addf %88, %90 : vector<8x32xf32>
    %c0_36 = arith.constant 0 : index
    %c0_37 = arith.constant 0 : index
    %c0_38 = arith.constant 0 : index
    %92 = vector.load %arg7[%c0_36, %c0_37, %c0_38] : memref<1x8x32xf32, #tpu.memory_space<vmem>>, vector<1x8x32xf32>
    %93 = vector.shape_cast %92 : vector<1x8x32xf32> to vector<8x32xf32>
    %94 = vector.shape_cast %91 : vector<8x32xf32> to vector<1x8x32xf32>
    tpu.vector_store %arg7[%c0_36, %c0_37, %c0_38], %94 {strides = array<i32>} : memref<1x8x32xf32, #tpu.memory_space<vmem>>, vector<1x8x32xf32>,
    return
  }
  func.func @transform_0(%arg0: i32) -> (i32, i32, i32) {
    %c0_i32 = arith.constant 0 : i32
    %c0_i32_0 = arith.constant 0 : i32
    %c0_i32_1 = arith.constant 0 : i32
    return %arg0, %c0_i32, %c0_i32_0 : i32, i32, i32
  }
  func.func @transform_1(%arg0: i32) -> (i32, i32, i32) {
    %c0_i32 = arith.constant 0 : i32
    %c0_i32_0 = arith.constant 0 : i32
    %c0_i32_1 = arith.constant 0 : i32
    return %arg0, %c0_i32, %c0_i32_0 : i32, i32, i32
  }
  func.func @transform_2(%arg0: i32) -> (i32, i32) {
    %c0_i32 = arith.constant 0 : i32
    %c0_i32_0 = arith.constant 0 : i32
    %c0_i32_1 = arith.constant 0 : i32
    return %c0_i32, %c0_i32_0 : i32, i32
  }
  func.func @transform_3(%arg0: i32) -> (i32, i32) {
    %c0_i32 = arith.constant 0 : i32
    %c0_i32_0 = arith.constant 0 : i32
    %c0_i32_1 = arith.constant 0 : i32
    return %c0_i32, %c0_i32_0 : i32, i32
  }
  func.func @transform_4(%arg0: i32) -> (i32, i32) {
    %c0_i32 = arith.constant 0 : i32
    %c0_i32_0 = arith.constant 0 : i32
    %c0_i32_1 = arith.constant 0 : i32
    return %c0_i32, %c0_i32_0 : i32, i32
  }
  func.func @transform_5(%arg0: i32) -> (i32, i32) {
    %c0_i32 = arith.constant 0 : i32
    %c0_i32_0 = arith.constant 0 : i32
    %c0_i32_1 = arith.constant 0 : i32
    return %c0_i32, %c0_i32_0 : i32, i32
  }
  func.func @transform_6(%arg0: i32) -> (i32, i32, i32) {
    %c0_i32 = arith.constant 0 : i32
    %c0_i32_0 = arith.constant 0 : i32
    %c0_i32_1 = arith.constant 0 : i32
    return %arg0, %c0_i32, %c0_i32_0 : i32, i32, i32
  }
}

</mosaic_0001>

<llo_original>
// kernel: tpu_custom_call.1
$region0: #{tpu_custom_call.1}
  #allocation0 [shape = 'u32[]', space=smem, size = 0x4, offset = 0x4, fixed_abs, tag = 'smem constant byte address 0x4 - core index']
  #allocation1 [shape = 'u32[144,128]{1,0:T(1,128)}', space=vmem, size = 0x12000, scoped, tag = 'internal scratch']
  %s0 = inlined_call_operand.vmem [shape: f32[2,8,32], index: 0, kind: input, shape index: {}]
  %s1 = inlined_call_operand.vmem [shape: f32[2,8,32], index: 1, kind: input, shape index: {}]
  %s2 = inlined_call_operand.vmem [shape: f32[32,64], index: 2, kind: input, shape index: {}]
  %s3 = inlined_call_operand.vmem [shape: f32[32,128], index: 3, kind: input, shape index: {}]
  %s4 = inlined_call_operand.vmem [shape: f32[64,32], index: 4, kind: input, shape index: {}]
  %s5 = inlined_call_operand.vmem [shape: f32[1,32], index: 5, kind: input, shape index: {}]
  %s6 = inlined_call_operand.hbm [shape: f32[2,8,32], index: 6, kind: output, shape index: {}]
  %s7 = sld [smem:[#allocation0]]
  $region57: #{tpu_custom_call.1} parent=0
    _
  %s9 = ssub.s32 1, %s7
  %s10 = scalar_select 0, %s9, %s7
  $region1: #{tpu_custom_call.1} parent=0
    #allocation2 [shape = 'u8[8192]{0}', space=vmem, size = 0x2000, scoped, tag = 'output window, operand 0']
    #allocation3 [shape = 's32[2]{0}', space=sflag, size = 0x8, scoped, tag = 'scoped memory for tpu_custom_call.1']
    %11 = vsyncpa [#allocation3], 0
    %s12 = scalar_lea.sflag [#allocation3], 1
    %13 = vsyncpa %s12, 0
    loop: start=0, step=1, limit=4
    $region2: #{tpu_custom_call.1} parent=1 // loop_pre_header
      _
    $region3: #{tpu_custom_call.1} parent=1 // loop_header
      %s15 = sphi 0, %s19
      %p16 = scmp.ge.s32.totalorder %s15, 4
      %s25 = sphi 0, %s27
      %s28 = sphi 0, %s25
      %s29 = sphi 0, %s28
      %s45 = sphi 0, %s29
      %s51 = sphi 0, %s53
      %s54 = sphi 0, %s51
      %s55 = sphi 0, %s54
      %s71 = sphi 0, %s55
      %s75 = sphi 0, %s75
      %s77 = sphi 0, %s75
      %s78 = sphi 0, %s77
      %s92 = sphi 0, %s78
      %s96 = sphi 0, %s96
      %s98 = sphi 0, %s96
      %s99 = sphi 0, %s98
      %s113 = sphi 0, %s99
      %s117 = sphi 0, %s117
      %s119 = sphi 0, %s117
      %s120 = sphi 0, %s119
      %s134 = sphi 0, %s120
      %s138 = sphi 0, %s138
      %s140 = sphi 0, %s138
      %s141 = sphi 0, %s140
      %s155 = sphi 0, %s141
      %s161 = sphi 0, %s163
      %s164 = sphi 0, %s161
      %s165 = sphi 0, %s164
      %s181 = sphi 0, %s165
    $region4: #{tpu_custom_call.1} parent=1 // loop_header_branch
      %18 = sbr.rel (%p16) target = $region8
    $region5: #{tpu_custom_call.1} parent=1 // loop_body
      %s20 = ssub.s32 %s15, 1
      %s21 = ssub.s32 %s15, 2
      %s22 = sadd.s32 %s15, 1
      %s23 = ssub.s32 %s15, %s22
      %p24 = scmp.eq.s32.totalorder %s23, 0
      %s26 = sadd.s32 %s25, 1
      %s27 = scalar_select %p24, %s25, %s26
      %p30 = pneg %p24
      %p31 = scmp.eq.s32.totalorder %s15, 1
      %p32 = por %p30, %p31
      %p33 = scmp.ne.s32.totalorder %s25, %s28
      %p34 = scmp.eq.s32.totalorder %s15, 0
      %p35 = por %p33, %p34
      %p36 = scmp.ne.s32.totalorder %s25, %s28
      %p37 = scmp.eq.s32.totalorder %s20, 1
      %p38 = por %p36, %p37
      %p39 = scmp.ne.s32.totalorder %s28, %s29
      %p40 = scmp.eq.s32.totalorder %s20, 0
      %p41 = por %p39, %p40
      %p42 = scmp.ne.s32.totalorder %s28, %s29
      %p43 = scmp.eq.s32.totalorder %s21, 1
      %p44 = por %p42, %p43
      %p46 = scmp.ne.s32.totalorder %s29, %s45
      %p47 = scmp.eq.s32.totalorder %s21, 0
      %p48 = por %p46, %p47
      %s49 = ssub.s32 %s15, %s22
      %p50 = scmp.eq.s32.totalorder %s49, 0
      %s52 = sadd.s32 %s51, 1
      %s53 = scalar_select %p50, %s51, %s52
      %p56 = pneg %p50
      %p57 = scmp.eq.s32.totalorder %s15, 1
      %p58 = por %p56, %p57
      %p59 = scmp.ne.s32.totalorder %s51, %s54
      %p60 = scmp.eq.s32.totalorder %s15, 0
      %p61 = por %p59, %p60
      %p62 = scmp.ne.s32.totalorder %s51, %s54
      %p63 = scmp.eq.s32.totalorder %s20, 1
      %p64 = por %p62, %p63
      %p65 = scmp.ne.s32.totalorder %s54, %s55
      %p66 = scmp.eq.s32.totalorder %s20, 0
      %p67 = por %p65, %p66
      %p68 = scmp.ne.s32.totalorder %s54, %s55
      %p69 = scmp.eq.s32.totalorder %s21, 1
      %p70 = por %p68, %p69
      %p72 = scmp.ne.s32.totalorder %s55, %s71
      %p73 = scmp.eq.s32.totalorder %s21, 0
      %p74 = por %p72, %p73
      %s76 = sadd.s32 %s75, 1
      %p79 = scmp.eq.s32.totalorder %s15, 1
      %p80 = scmp.ne.s32.totalorder %s75, %s77
      %p81 = scmp.eq.s32.totalorder %s15, 0
      %p82 = por %p80, %p81
      %p83 = scmp.ne.s32.totalorder %s75, %s77
      %p84 = scmp.eq.s32.totalorder %s20, 1
      %p85 = por %p83, %p84
      %p86 = scmp.ne.s32.totalorder %s77, %s78
      %p87 = scmp.eq.s32.totalorder %s20, 0
      %p88 = por %p86, %p87
      %p89 = scmp.ne.s32.totalorder %s77, %s78
      %p90 = scmp.eq.s32.totalorder %s21, 1
      %p91 = por %p89, %p90
      %p93 = scmp.ne.s32.totalorder %s78, %s92
      %p94 = scmp.eq.s32.totalorder %s21, 0
      %p95 = por %p93, %p94
      %s97 = sadd.s32 %s96, 1
      %p100 = scmp.eq.s32.totalorder %s15, 1
      %p101 = scmp.ne.s32.totalorder %s96, %s98
      %p102 = scmp.eq.s32.totalorder %s15, 0
      %p103 = por %p101, %p102
      %p104 = scmp.ne.s32.totalorder %s96, %s98
      %p105 = scmp.eq.s32.totalorder %s20, 1
      %p106 = por %p104, %p105
      %p107 = scmp.ne.s32.totalorder %s98, %s99
      %p108 = scmp.eq.s32.totalorder %s20, 0
      %p109 = por %p107, %p108
      %p110 = scmp.ne.s32.totalorder %s98, %s99
      %p111 = scmp.eq.s32.totalorder %s21, 1
      %p112 = por %p110, %p111
      %p114 = scmp.ne.s32.totalorder %s99, %s113
      %p115 = scmp.eq.s32.totalorder %s21, 0
      %p116 = por %p114, %p115
      %s118 = sadd.s32 %s117, 1
      %p121 = scmp.eq.s32.totalorder %s15, 1
      %p122 = scmp.ne.s32.totalorder %s117, %s119
      %p123 = scmp.eq.s32.totalorder %s15, 0
      %p124 = por %p122, %p123
      %p125 = scmp.ne.s32.totalorder %s117, %s119
      %p126 = scmp.eq.s32.totalorder %s20, 1
      %p127 = por %p125, %p126
      %p128 = scmp.ne.s32.totalorder %s119, %s120
      %p129 = scmp.eq.s32.totalorder %s20, 0
      %p130 = por %p128, %p129
      %p131 = scmp.ne.s32.totalorder %s119, %s120
      %p132 = scmp.eq.s32.totalorder %s21, 1
      %p133 = por %p131, %p132
      %p135 = scmp.ne.s32.totalorder %s120, %s134
      %p136 = scmp.eq.s32.totalorder %s21, 0
      %p137 = por %p135, %p136
      %s139 = sadd.s32 %s138, 1
      %p142 = scmp.eq.s32.totalorder %s15, 1
      %p143 = scmp.ne.s32.totalorder %s138, %s140
      %p144 = scmp.eq.s32.totalorder %s15, 0
      %p145 = por %p143, %p144
      %p146 = scmp.ne.s32.totalorder %s138, %s140
      %p147 = scmp.eq.s32.totalorder %s20, 1
      %p148 = por %p146, %p147
      %p149 = scmp.ne.s32.totalorder %s140, %s141
      %p150 = scmp.eq.s32.totalorder %s20, 0
      %p151 = por %p149, %p150
      %p152 = scmp.ne.s32.totalorder %s140, %s141
      %p153 = scmp.eq.s32.totalorder %s21, 1
      %p154 = por %p152, %p153
      %p156 = scmp.ne.s32.totalorder %s141, %s155
      %p157 = scmp.eq.s32.totalorder %s21, 0
      %p158 = por %p156, %p157
      %s159 = ssub.s32 %s15, %s22
      %p160 = scmp.eq.s32.totalorder %s159, 0
      %s162 = sadd.s32 %s161, 1
      %s163 = scalar_select %p160, %s161, %s162
      %p166 = pneg %p160
      %p167 = scmp.eq.s32.totalorder %s15, 1
      %p168 = por %p166, %p167
      %p169 = scmp.ne.s32.totalorder %s161, %s164
      %p170 = scmp.eq.s32.totalorder %s15, 0
      %p171 = por %p169, %p170
      %p172 = scmp.ne.s32.totalorder %s161, %s164
      %p173 = scmp.eq.s32.totalorder %s20, 1
      %p174 = por %p172, %p173
      %p175 = scmp.ne.s32.totalorder %s164, %s165
      %p176 = scmp.eq.s32.totalorder %s20, 0
      %p177 = por %p175, %p176
      %p178 = scmp.ne.s32.totalorder %s164, %s165
      %p179 = scmp.eq.s32.totalorder %s21, 1
      %p180 = por %p178, %p179
      %p182 = scmp.ne.s32.totalorder %s165, %s181
      %p183 = scmp.eq.s32.totalorder %s21, 0
      %p184 = por %p182, %p183
      %p185 = scmp.le.s32.totalorder 1, %s15
      %p186 = scmp.lt.s32.totalorder %s15, 3
      %p187 = pnand %p185, %p186
      %p188 = pneg %p187
      // Predicated region
      $region9: #{tpu_custom_call.1} parent=5 // pred_check
        _
      $region10: #{tpu_custom_call.1} parent=5 // pred_check_branch
        %190 = sbr.rel (%p187) target = $region12
      $region11: #{tpu_custom_call.1} parent=5 // pred_region
        %s191 = ssub.s32 %s15, 1
        // Predicated region
        $region13: #{tpu_custom_call.1} parent=11 // pred_check
          %p192 = pneg %p88
        $region14: #{tpu_custom_call.1} parent=11 // pred_check_branch
          %194 = sbr.rel (%p192) target = $region16
        $region15: #{tpu_custom_call.1} parent=11 // pred_region
          _
        $region16: #{tpu_custom_call.1} parent=11 // pred_fallthru
          _
        // Predicated region
        $region17: #{tpu_custom_call.1} parent=11 // pred_check
          %p195 = pneg %p109
        $region18: #{tpu_custom_call.1} parent=11 // pred_check_branch
          %197 = sbr.rel (%p195) target = $region20
        $region19: #{tpu_custom_call.1} parent=11 // pred_region
          _
        $region20: #{tpu_custom_call.1} parent=11 // pred_fallthru
          _
        // Predicated region
        $region21: #{tpu_custom_call.1} parent=11 // pred_check
          %p198 = pneg %p130
        $region22: #{tpu_custom_call.1} parent=11 // pred_check_branch
          %200 = sbr.rel (%p198) target = $region24
        $region23: #{tpu_custom_call.1} parent=11 // pred_region
          _
        $region24: #{tpu_custom_call.1} parent=11 // pred_fallthru
          _
        // Predicated region
        $region25: #{tpu_custom_call.1} parent=11 // pred_check
          %p201 = pneg %p151
        $region26: #{tpu_custom_call.1} parent=11 // pred_check_branch
          %203 = sbr.rel (%p201) target = $region28
        $region27: #{tpu_custom_call.1} parent=11 // pred_region
          _
        $region28: #{tpu_custom_call.1} parent=11 // pred_fallthru
          _
      $region12: #{tpu_custom_call.1} parent=5 // pred_fallthru
        _
      %p204 = scmp.lt.s32.totalorder %s15, 2
      // Predicated region
      $region29: #{tpu_custom_call.1} parent=5 // pred_check
        %p205 = pneg %p204
      $region30: #{tpu_custom_call.1} parent=5 // pred_check_branch
        %207 = sbr.rel (%p205) target = $region32
      $region31: #{tpu_custom_call.1} parent=5 // pred_region
        // Predicated region
        $region33: #{tpu_custom_call.1} parent=31 // pred_check
          %p208 = pneg %p35
        $region34: #{tpu_custom_call.1} parent=31 // pred_check_branch
          %210 = sbr.rel (%p208) target = $region36
        $region35: #{tpu_custom_call.1} parent=31 // pred_region
          %p211 = scmp.lt.s32.totalorder %s15, 1
          %s212 = scalar_select %p211, %s15, 1
          %s213 = smul.addr %s212, 8
          %s214 = scalar_lea.vmem %s0, %s213
        $region36: #{tpu_custom_call.1} parent=31 // pred_fallthru
          _
        // Predicated region
        $region37: #{tpu_custom_call.1} parent=31 // pred_check
          %p215 = pneg %p61
        $region38: #{tpu_custom_call.1} parent=31 // pred_check_branch
          %217 = sbr.rel (%p215) target = $region40
        $region39: #{tpu_custom_call.1} parent=31 // pred_region
          %p218 = scmp.lt.s32.totalorder %s15, 1
          %s219 = scalar_select %p218, %s15, 1
          %s220 = smul.addr %s219, 8
          %s221 = scalar_lea.vmem %s1, %s220
        $region40: #{tpu_custom_call.1} parent=31 // pred_fallthru
          _
      $region32: #{tpu_custom_call.1} parent=5 // pred_fallthru
        _
      %p222 = scmp.le.s32.totalorder 1, %s15
      %p223 = scmp.lt.s32.totalorder %s15, 3
      %p224 = pnand %p222, %p223
      %p225 = pneg %p224
      // Predicated region
      $region41: #{tpu_custom_call.1} parent=5 // pred_check
        _
      $region42: #{tpu_custom_call.1} parent=5 // pred_check_branch
        %227 = sbr.rel (%p224) target = $region44
      $region43: #{tpu_custom_call.1} parent=5 // pred_region
        %s228 = ssub.s32 %s15, 1
        %p229 = scmp.lt.s32.totalorder %s20, 1
        %s230 = scalar_select %p229, %s20, 1
        %s231 = smul.addr %s230, 8
        %s232 = scalar_lea.vmem %s0, %s231
        %p233 = pneg %p41
        %p234 = pneg %p38
        %p235 = scmp.lt.s32.totalorder %s20, 1
        %s236 = scalar_select %p235, %s20, 1
        %s237 = smul.addr %s236, 8
        %s238 = scalar_lea.vmem %s1, %s237
        %p239 = pneg %p67
        %p240 = pneg %p64
        %p241 = pneg %p88
        %p242 = pneg %p85
        %p243 = pneg %p109
        %p244 = pneg %p106
        %p245 = pneg %p130
        %p246 = pneg %p127
        %p247 = pneg %p151
        %p248 = pneg %p148
        %p249 = pneg %p177
        %p250 = pneg %p174
        %s251 = sand.u32 %s164, 1
        %s252 = scalar_lea.sflag [#allocation3], %s251
        %s253 = sand.u32 %s164, 1
        %s254 = smul.addr %s253, 8
        %s255 = scalar_lea.vmem [#allocation2], %s254
        %p256 = scmp.lt.s32.totalorder %s20, 1
        %s257 = scalar_select %p256, %s20, 1
        %s258 = smul.addr %s257, 8
        %s259 = scalar_lea.vmem %s0, %s258
        %p260 = scmp.lt.s32.totalorder %s20, 1
        %s261 = scalar_select %p260, %s20, 1
        %s262 = smul.addr %s261, 8
        %s263 = scalar_lea.vmem %s1, %s262
        %v264 = vld [vmem:[%s259] sm:$0xff]
        %v265 = vld [vmem:[%s263] sm:$0xff]
        %v266 = vld [vmem:[%s2] sm:$0xff]
        %v267 = vld [vmem:[%s2 + $0x8] sm:$0xff]
        %v268 = vld [vmem:[%s2 + $0x10] sm:$0xff]
        %v269 = vld [vmem:[%s2 + $0x18] sm:$0xff]
        %vm270 = vcmask 261120
        %v272 = vsel %vm270, %v264, 0
        %274 = vmatprep.subr.mxu0 0.0
        %275 = vmatpush1.msra.mxu0 %v266
        %276 = vmatprep.subr.mxu0 0.0
        %277 = vmatpush1.msra.mxu0 %v267
        %278 = vmatprep.subr.mxu0 0.0
        %279 = vmatpush1.msra.mxu0 %v268
        %280 = vmatprep.subr.mxu0 0.0
        %281 = vmatpush1.msra.mxu0 %v269
        %282 = vmatprep.subr.mxu0 0.0
        %283 = vmatpush1.msra.mxu0 0.0
        %284 = vmatprep.subr.mxu0 0.0
        %285 = vmatpush1.msra.mxu0 0.0
        %286 = vmatprep.subr.mxu0 0.0
        %287 = vmatpush1.msra.mxu0 0.0
        %288 = vmatprep.subr.mxu0 0.0
        %289 = vmatpush1.msra.mxu0 0.0
        %290 = vmatprep.subr.mxu0 0.0
        %291 = vmatpush1.msra.mxu0 0.0
        %292 = vmatprep.subr.mxu0 0.0
        %293 = vmatpush1.msra.mxu0 0.0
        %294 = vmatprep.subr.mxu0 0.0
        %295 = vmatpush1.msra.mxu0 0.0
        %296 = vmatprep.subr.mxu0 0.0
        %297 = vmatpush1.msra.mxu0 0.0
        %298 = vmatprep.subr.mxu0 0.0
        %299 = vmatpush1.msra.mxu0 0.0
        %300 = vmatprep.subr.mxu0 0.0
        %301 = vmatpush1.msra.mxu0 0.0
        %302 = vmatprep.subr.mxu0 0.0
        %303 = vmatpush1.msra.mxu0 0.0
        %304 = vmatprep.subr.mxu0 0.0
        %305 = vmatpush1.msra.mxu0 0.0
        %306 = vmatprep.subr.mxu0 0.0
        %307 = vmatpush1.msra.mxu0 0.0
        %308 = vmatprep.subr.mxu0 0.0
        %309 = vmatpush1.msra.mxu0 0.0
        %310 = vmatprep.subr.mxu0 0.0
        %311 = vmatpush1.msra.mxu0 0.0
        %312 = vmatprep.subr.mxu0 0.0
        %313 = vmatpush1.msra.mxu0 0.0
        %314 = vmatprep.subr.mxu0 0.0
        %315 = vmatpush1.msra.mxu0 0.0
        %316 = vmatprep.subr.mxu0 0.0
        %317 = vmatpush1.msra.mxu0 0.0
        %318 = vmatprep.subr.mxu0 0.0
        %319 = vmatpush1.msra.mxu0 0.0
        %320 = vmatprep.subr.mxu0 0.0
        %321 = vmatpush1.msra.mxu0 0.0
        %322 = vmatprep.subr.mxu0 0.0
        %323 = vmatpush1.msra.mxu0 0.0
        %324 = vmatprep.subr.mxu0 0.0
        %325 = vmatpush1.msra.mxu0 0.0
        %326 = vmatprep.subr.mxu0 0.0
        %327 = vmatpush1.msra.mxu0 0.0
        %328 = vmatprep.subr.mxu0 0.0
        %329 = vmatpush1.msra.mxu0 0.0
        %330 = vmatprep.subr.mxu0 0.0
        %331 = vmatpush1.msra.mxu0 0.0
        %332 = vmatprep.subr.mxu0 0.0
        %333 = vmatpush1.msra.mxu0 0.0
        %334 = vmatprep.subr.mxu0 0.0
        %335 = vmatpush1.msra.mxu0 0.0
        %336 = vmatprep.subr.mxu0 0.0
        %337 = vmatpush1.msra.mxu0 0.0
        %338 = vmatprep.mubr.f32.mxu0 0.0
        %339 = vmatmul.mubr.f32.gmra.mrb[0].mxu0 %v272
        %v340 = vpop.f32.mrb[0].mxu0
        %v341 = vadd.f32 0.0, %v340
        %v342 = vpop.f32.mrb[0].mxu0
        %343 = vdwg.mxu0
        %v344 = vld [vmem:[%s3] sm:$0xff]
        %v345 = vld [vmem:[%s3 + $0x8] sm:$0xff]
        %v346 = vld [vmem:[%s3 + $0x10] sm:$0xff]
        %v347 = vld [vmem:[%s3 + $0x18] sm:$0xff]
        %v349 = vsel %vm270, %v265, 0
        %351 = vmatprep.subr.mxu0 0.0
        %352 = vmatpush1.msra.mxu0 %v344
        %353 = vmatprep.subr.mxu0 0.0
        %354 = vmatpush1.msra.mxu0 %v345
        %355 = vmatprep.subr.mxu0 0.0
        %356 = vmatpush1.msra.mxu0 %v346
        %357 = vmatprep.subr.mxu0 0.0
        %358 = vmatpush1.msra.mxu0 %v347
        %359 = vmatprep.subr.mxu0 0.0
        %360 = vmatpush1.msra.mxu0 0.0
        %361 = vmatprep.subr.mxu0 0.0
        %362 = vmatpush1.msra.mxu0 0.0
        %363 = vmatprep.subr.mxu0 0.0
        %364 = vmatpush1.msra.mxu0 0.0
        %365 = vmatprep.subr.mxu0 0.0
        %366 = vmatpush1.msra.mxu0 0.0
        %367 = vmatprep.subr.mxu0 0.0
        %368 = vmatpush1.msra.mxu0 0.0
        %369 = vmatprep.subr.mxu0 0.0
        %370 = vmatpush1.msra.mxu0 0.0
        %371 = vmatprep.subr.mxu0 0.0
        %372 = vmatpush1.msra.mxu0 0.0
        %373 = vmatprep.subr.mxu0 0.0
        %374 = vmatpush1.msra.mxu0 0.0
        %375 = vmatprep.subr.mxu0 0.0
        %376 = vmatpush1.msra.mxu0 0.0
        %377 = vmatprep.subr.mxu0 0.0
        %378 = vmatpush1.msra.mxu0 0.0
        %379 = vmatprep.subr.mxu0 0.0
        %380 = vmatpush1.msra.mxu0 0.0
        %381 = vmatprep.subr.mxu0 0.0
        %382 = vmatpush1.msra.mxu0 0.0
        %383 = vmatprep.subr.mxu0 0.0
        %384 = vmatpush1.msra.mxu0 0.0
        %385 = vmatprep.subr.mxu0 0.0
        %386 = vmatpush1.msra.mxu0 0.0
        %387 = vmatprep.subr.mxu0 0.0
        %388 = vmatpush1.msra.mxu0 0.0
        %389 = vmatprep.subr.mxu0 0.0
        %390 = vmatpush1.msra.mxu0 0.0
        %391 = vmatprep.subr.mxu0 0.0
        %392 = vmatpush1.msra.mxu0 0.0
        %393 = vmatprep.subr.mxu0 0.0
        %394 = vmatpush1.msra.mxu0 0.0
        %395 = vmatprep.subr.mxu0 0.0
        %396 = vmatpush1.msra.mxu0 0.0
        %397 = vmatprep.subr.mxu0 0.0
        %398 = vmatpush1.msra.mxu0 0.0
        %399 = vmatprep.subr.mxu0 0.0
        %400 = vmatpush1.msra.mxu0 0.0
        %401 = vmatprep.subr.mxu0 0.0
        %402 = vmatpush1.msra.mxu0 0.0
        %403 = vmatprep.subr.mxu0 0.0
        %404 = vmatpush1.msra.mxu0 0.0
        %405 = vmatprep.subr.mxu0 0.0
        %406 = vmatpush1.msra.mxu0 0.0
        %407 = vmatprep.subr.mxu0 0.0
        %408 = vmatpush1.msra.mxu0 0.0
        %409 = vmatprep.subr.mxu0 0.0
        %410 = vmatpush1.msra.mxu0 0.0
        %411 = vmatprep.subr.mxu0 0.0
        %412 = vmatpush1.msra.mxu0 0.0
        %413 = vmatprep.subr.mxu0 0.0
        %414 = vmatpush1.msra.mxu0 0.0
        %415 = vmatprep.mubr.f32.mxu0 0.0
        %416 = vmatmul.mubr.f32.gmra.mrb[0].mxu0 %v349
        %v417 = vpop.f32.mrb[0].mxu0
        %v418 = vadd.f32 0.0, %v417
        %v419 = vpop.f32.mrb[0].mxu0
        %420 = vdwg.mxu0
        %v421 = vmul.f32 %v341, 0.25
        %vm422 = vcmask 130048
        %v424 = vsel %vm422, %v421, 0
        %v427 = vsel %vm422, %v418, 0
        %429 = vmatprep.subr.mxu0 0.0
        %430 = vmatpush1.xpose.msra.mxu0 %v427
        %431 = vmatprep.subr.mxu0 0.0
        %432 = vmatpush1.xpose.msra.mxu0 0.0
        %433 = vmatprep.subr.mxu0 0.0
        %434 = vmatpush1.xpose.msra.mxu0 0.0
        %435 = vmatprep.subr.mxu0 0.0
        %436 = vmatpush1.xpose.msra.mxu0 0.0
        %437 = vmatprep.subr.mxu0 0.0
        %438 = vmatpush1.xpose.msra.mxu0 0.0
        %439 = vmatprep.subr.mxu0 0.0
        %440 = vmatpush1.xpose.msra.mxu0 0.0
        %441 = vmatprep.subr.mxu0 0.0
        %442 = vmatpush1.xpose.msra.mxu0 0.0
        %443 = vmatprep.subr.mxu0 0.0
        %444 = vmatpush1.xpose.msra.mxu0 0.0
        %445 = vmatprep.subr.mxu0 0.0
        %446 = vmatpush1.xpose.msra.mxu0 0.0
        %447 = vmatprep.subr.mxu0 0.0
        %448 = vmatpush1.xpose.msra.mxu0 0.0
        %449 = vmatprep.subr.mxu0 0.0
        %450 = vmatpush1.xpose.msra.mxu0 0.0
        %451 = vmatprep.subr.mxu0 0.0
        %452 = vmatpush1.xpose.msra.mxu0 0.0
        %453 = vmatprep.subr.mxu0 0.0
        %454 = vmatpush1.xpose.msra.mxu0 0.0
        %455 = vmatprep.subr.mxu0 0.0
        %456 = vmatpush1.xpose.msra.mxu0 0.0
        %457 = vmatprep.subr.mxu0 0.0
        %458 = vmatpush1.xpose.msra.mxu0 0.0
        %459 = vmatprep.subr.mxu0 0.0
        %460 = vmatpush1.xpose.msra.mxu0 0.0
        %461 = vmatprep.subr.mxu0 0.0
        %462 = vmatpush1.xpose.msra.mxu0 0.0
        %463 = vmatprep.subr.mxu0 0.0
        %464 = vmatpush1.xpose.msra.mxu0 0.0
        %465 = vmatprep.subr.mxu0 0.0
        %466 = vmatpush1.xpose.msra.mxu0 0.0
        %467 = vmatprep.subr.mxu0 0.0
        %468 = vmatpush1.xpose.msra.mxu0 0.0
        %469 = vmatprep.subr.mxu0 0.0
        %470 = vmatpush1.xpose.msra.mxu0 0.0
        %471 = vmatprep.subr.mxu0 0.0
        %472 = vmatpush1.xpose.msra.mxu0 0.0
        %473 = vmatprep.subr.mxu0 0.0
        %474 = vmatpush1.xpose.msra.mxu0 0.0
        %475 = vmatprep.subr.mxu0 0.0
        %476 = vmatpush1.xpose.msra.mxu0 0.0
        %477 = vmatprep.subr.mxu0 0.0
        %478 = vmatpush1.xpose.msra.mxu0 0.0
        %479 = vmatprep.subr.mxu0 0.0
        %480 = vmatpush1.xpose.msra.mxu0 0.0
        %481 = vmatprep.subr.mxu0 0.0
        %482 = vmatpush1.xpose.msra.mxu0 0.0
        %483 = vmatprep.subr.mxu0 0.0
        %484 = vmatpush1.xpose.msra.mxu0 0.0
        %485 = vmatprep.subr.mxu0 0.0
        %486 = vmatpush1.xpose.msra.mxu0 0.0
        %487 = vmatprep.subr.mxu0 0.0
        %488 = vmatpush1.xpose.msra.mxu0 0.0
        %489 = vmatprep.subr.mxu0 0.0
        %490 = vmatpush1.xpose.msra.mxu0 0.0
        %491 = vmatprep.subr.mxu0 0.0
        %492 = vmatpush1.xpose.msra.mxu0 0.0
        %493 = vmatprep.mubr.f32.mxu0 0.0
        %494 = vmatmul.mubr.f32.gmra.mrb[0].mxu0 %v424
        %v495 = vpop.f32.mrb[0].mxu0
        %v496 = vadd.f32 0.0, %v495
        %v497 = vpop.f32.mrb[0].mxu0
        %498 = vdwg.mxu0
        %vm499 = vcmask 64512
        %v500 = vsel %vm499, %v496, -inf
        %501 = vmax.xlane.f32.xlu0 %v500
        %v502 = vpop.xlane.xlu0 %501
        %v503 = vsub.f32 %v496, %v502
        %v504 = vmul.f32 %v503, 1.442695
        %v505 = vpow.pop %v504
        %v506 = vsel %vm499, %v505, 0.0
        %507 = vadd.xlane.f32.xlu0 %v506
        %v508 = vpop.xlane.xlu0 %507
        %v509 = vrcp.pop %v508
        %v510 = vmul.f32 %v508, %v509
        %v511 = vsub.f32 2.0, %v510
        %v512 = vmul.f32 %v509, %v511
        %v513 = vmul.f32 %v505, %v512
        %514 = vrot.lane.b32.xlu0 %v418, 64
        %v515 = vpop.permute.xlu0 %514
        %v518 = vsel %vm499, %v513, 0
        %520 = vmatprep.subr.mxu0 0.0
        %521 = vmatpush1.msra.mxu0 %v515
        %522 = vmatprep.subr.mxu0 0.0
        %523 = vmatpush1.msra.mxu0 0.0
        %524 = vmatprep.subr.mxu0 0.0
        %525 = vmatpush1.msra.mxu0 0.0
        %526 = vmatprep.subr.mxu0 0.0
        %527 = vmatpush1.msra.mxu0 0.0
        %528 = vmatprep.subr.mxu0 0.0
        %529 = vmatpush1.msra.mxu0 0.0
        %530 = vmatprep.subr.mxu0 0.0
        %531 = vmatpush1.msra.mxu0 0.0
        %532 = vmatprep.subr.mxu0 0.0
        %533 = vmatpush1.msra.mxu0 0.0
        %534 = vmatprep.subr.mxu0 0.0
        %535 = vmatpush1.msra.mxu0 0.0
        %536 = vmatprep.subr.mxu0 0.0
        %537 = vmatpush1.msra.mxu0 0.0
        %538 = vmatprep.subr.mxu0 0.0
        %539 = vmatpush1.msra.mxu0 0.0
        %540 = vmatprep.subr.mxu0 0.0
        %541 = vmatpush1.msra.mxu0 0.0
        %542 = vmatprep.subr.mxu0 0.0
        %543 = vmatpush1.msra.mxu0 0.0
        %544 = vmatprep.subr.mxu0 0.0
        %545 = vmatpush1.msra.mxu0 0.0
        %546 = vmatprep.subr.mxu0 0.0
        %547 = vmatpush1.msra.mxu0 0.0
        %548 = vmatprep.subr.mxu0 0.0
        %549 = vmatpush1.msra.mxu0 0.0
        %550 = vmatprep.subr.mxu0 0.0
        %551 = vmatpush1.msra.mxu0 0.0
        %552 = vmatprep.subr.mxu0 0.0
        %553 = vmatpush1.msra.mxu0 0.0
        %554 = vmatprep.subr.mxu0 0.0
        %555 = vmatpush1.msra.mxu0 0.0
        %556 = vmatprep.subr.mxu0 0.0
        %557 = vmatpush1.msra.mxu0 0.0
        %558 = vmatprep.subr.mxu0 0.0
        %559 = vmatpush1.msra.mxu0 0.0
        %560 = vmatprep.subr.mxu0 0.0
        %561 = vmatpush1.msra.mxu0 0.0
        %562 = vmatprep.subr.mxu0 0.0
        %563 = vmatpush1.msra.mxu0 0.0
        %564 = vmatprep.subr.mxu0 0.0
        %565 = vmatpush1.msra.mxu0 0.0
        %566 = vmatprep.subr.mxu0 0.0
        %567 = vmatpush1.msra.mxu0 0.0
        %568 = vmatprep.subr.mxu0 0.0
        %569 = vmatpush1.msra.mxu0 0.0
        %570 = vmatprep.subr.mxu0 0.0
        %571 = vmatpush1.msra.mxu0 0.0
        %572 = vmatprep.subr.mxu0 0.0
        %573 = vmatpush1.msra.mxu0 0.0
        %574 = vmatprep.subr.mxu0 0.0
        %575 = vmatpush1.msra.mxu0 0.0
        %576 = vmatprep.subr.mxu0 0.0
        %577 = vmatpush1.msra.mxu0 0.0
        %578 = vmatprep.subr.mxu0 0.0
        %579 = vmatpush1.msra.mxu0 0.0
        %580 = vmatprep.subr.mxu0 0.0
        %581 = vmatpush1.msra.mxu0 0.0
        %582 = vmatprep.subr.mxu0 0.0
        %583 = vmatpush1.msra.mxu0 0.0
        %584 = vmatprep.mubr.f32.mxu0 0.0
        %585 = vmatmul.mubr.f32.gmra.mrb[0].mxu0 %v518
        %v586 = vpop.f32.mrb[0].mxu0
        %v587 = vadd.f32 0.0, %v586
        %v588 = vpop.f32.mrb[0].mxu0
        %589 = vdwg.mxu0
        %590 = vrot.lane.b32.xlu0 %v421, 112
        %v591 = vpop.permute.xlu0 %590
        %592 = vrot.lane.b32.xlu0 %v418, 112
        %v593 = vpop.permute.xlu0 %592
        %v594 = vsel %vm422, %v591, 0
        %v596 = vsel %vm422, %v593, 0
        %598 = vmatprep.subr.mxu0 0.0
        %599 = vmatpush1.xpose.msra.mxu0 %v596
        %600 = vmatprep.subr.mxu0 0.0
        %601 = vmatpush1.xpose.msra.mxu0 0.0
        %602 = vmatprep.subr.mxu0 0.0
        %603 = vmatpush1.xpose.msra.mxu0 0.0
        %604 = vmatprep.subr.mxu0 0.0
        %605 = vmatpush1.xpose.msra.mxu0 0.0
        %606 = vmatprep.subr.mxu0 0.0
        %607 = vmatpush1.xpose.msra.mxu0 0.0
        %608 = vmatprep.subr.mxu0 0.0
        %609 = vmatpush1.xpose.msra.mxu0 0.0
        %610 = vmatprep.subr.mxu0 0.0
        %611 = vmatpush1.xpose.msra.mxu0 0.0
        %612 = vmatprep.subr.mxu0 0.0
        %613 = vmatpush1.xpose.msra.mxu0 0.0
        %614 = vmatprep.subr.mxu0 0.0
        %615 = vmatpush1.xpose.msra.mxu0 0.0
        %616 = vmatprep.subr.mxu0 0.0
        %617 = vmatpush1.xpose.msra.mxu0 0.0
        %618 = vmatprep.subr.mxu0 0.0
        %619 = vmatpush1.xpose.msra.mxu0 0.0
        %620 = vmatprep.subr.mxu0 0.0
        %621 = vmatpush1.xpose.msra.mxu0 0.0
        %622 = vmatprep.subr.mxu0 0.0
        %623 = vmatpush1.xpose.msra.mxu0 0.0
        %624 = vmatprep.subr.mxu0 0.0
        %625 = vmatpush1.xpose.msra.mxu0 0.0
        %626 = vmatprep.subr.mxu0 0.0
        %627 = vmatpush1.xpose.msra.mxu0 0.0
        %628 = vmatprep.subr.mxu0 0.0
        %629 = vmatpush1.xpose.msra.mxu0 0.0
        %630 = vmatprep.subr.mxu0 0.0
        %631 = vmatpush1.xpose.msra.mxu0 0.0
        %632 = vmatprep.subr.mxu0 0.0
        %633 = vmatpush1.xpose.msra.mxu0 0.0
        %634 = vmatprep.subr.mxu0 0.0
        %635 = vmatpush1.xpose.msra.mxu0 0.0
        %636 = vmatprep.subr.mxu0 0.0
        %637 = vmatpush1.xpose.msra.mxu0 0.0
        %638 = vmatprep.subr.mxu0 0.0
        %639 = vmatpush1.xpose.msra.mxu0 0.0
        %640 = vmatprep.subr.mxu0 0.0
        %641 = vmatpush1.xpose.msra.mxu0 0.0
        %642 = vmatprep.subr.mxu0 0.0
        %643 = vmatpush1.xpose.msra.mxu0 0.0
        %644 = vmatprep.subr.mxu0 0.0
        %645 = vmatpush1.xpose.msra.mxu0 0.0
        %646 = vmatprep.subr.mxu0 0.0
        %647 = vmatpush1.xpose.msra.mxu0 0.0
        %648 = vmatprep.subr.mxu0 0.0
        %649 = vmatpush1.xpose.msra.mxu0 0.0
        %650 = vmatprep.subr.mxu0 0.0
        %651 = vmatpush1.xpose.msra.mxu0 0.0
        %652 = vmatprep.subr.mxu0 0.0
        %653 = vmatpush1.xpose.msra.mxu0 0.0
        %654 = vmatprep.subr.mxu0 0.0
        %655 = vmatpush1.xpose.msra.mxu0 0.0
        %656 = vmatprep.subr.mxu0 0.0
        %657 = vmatpush1.xpose.msra.mxu0 0.0
        %658 = vmatprep.subr.mxu0 0.0
        %659 = vmatpush1.xpose.msra.mxu0 0.0
        %660 = vmatprep.subr.mxu0 0.0
        %661 = vmatpush1.xpose.msra.mxu0 0.0
        %662 = vmatprep.mubr.f32.mxu0 0.0
        %663 = vmatmul.mubr.f32.gmra.mrb[0].mxu0 %v594
        %v664 = vpop.f32.mrb[0].mxu0
        %v665 = vadd.f32 0.0, %v664
        %v666 = vpop.f32.mrb[0].mxu0
        %667 = vdwg.mxu0
        %v668 = vsel %vm499, %v665, -inf
        %669 = vmax.xlane.f32.xlu0 %v668
        %v670 = vpop.xlane.xlu0 %669
        %v671 = vsub.f32 %v665, %v670
        %v672 = vmul.f32 %v671, 1.442695
        %v673 = vpow.pop %v672
        %v674 = vsel %vm499, %v673, 0.0
        %675 = vadd.xlane.f32.xlu0 %v674
        %v676 = vpop.xlane.xlu0 %675
        %v677 = vrcp.pop %v676
        %v678 = vmul.f32 %v676, %v677
        %v679 = vsub.f32 2.0, %v678
        %v680 = vmul.f32 %v677, %v679
        %v681 = vmul.f32 %v673, %v680
        %682 = vrot.lane.b32.xlu0 %v418, 48
        %v683 = vpop.permute.xlu0 %682
        %v686 = vsel %vm499, %v681, 0
        %688 = vmatprep.subr.mxu0 0.0
        %689 = vmatpush1.msra.mxu0 %v683
        %690 = vmatprep.subr.mxu0 0.0
        %691 = vmatpush1.msra.mxu0 0.0
        %692 = vmatprep.subr.mxu0 0.0
        %693 = vmatpush1.msra.mxu0 0.0
        %694 = vmatprep.subr.mxu0 0.0
        %695 = vmatpush1.msra.mxu0 0.0
        %696 = vmatprep.subr.mxu0 0.0
        %697 = vmatpush1.msra.mxu0 0.0
        %698 = vmatprep.subr.mxu0 0.0
        %699 = vmatpush1.msra.mxu0 0.0
        %700 = vmatprep.subr.mxu0 0.0
        %701 = vmatpush1.msra.mxu0 0.0
        %702 = vmatprep.subr.mxu0 0.0
        %703 = vmatpush1.msra.mxu0 0.0
        %704 = vmatprep.subr.mxu0 0.0
        %705 = vmatpush1.msra.mxu0 0.0
        %706 = vmatprep.subr.mxu0 0.0
        %707 = vmatpush1.msra.mxu0 0.0
        %708 = vmatprep.subr.mxu0 0.0
        %709 = vmatpush1.msra.mxu0 0.0
        %710 = vmatprep.subr.mxu0 0.0
        %711 = vmatpush1.msra.mxu0 0.0
        %712 = vmatprep.subr.mxu0 0.0
        %713 = vmatpush1.msra.mxu0 0.0
        %714 = vmatprep.subr.mxu0 0.0
        %715 = vmatpush1.msra.mxu0 0.0
        %716 = vmatprep.subr.mxu0 0.0
        %717 = vmatpush1.msra.mxu0 0.0
        %718 = vmatprep.subr.mxu0 0.0
        %719 = vmatpush1.msra.mxu0 0.0
        %720 = vmatprep.subr.mxu0 0.0
        %721 = vmatpush1.msra.mxu0 0.0
        %722 = vmatprep.subr.mxu0 0.0
        %723 = vmatpush1.msra.mxu0 0.0
        %724 = vmatprep.subr.mxu0 0.0
        %725 = vmatpush1.msra.mxu0 0.0
        %726 = vmatprep.subr.mxu0 0.0
        %727 = vmatpush1.msra.mxu0 0.0
        %728 = vmatprep.subr.mxu0 0.0
        %729 = vmatpush1.msra.mxu0 0.0
        %730 = vmatprep.subr.mxu0 0.0
        %731 = vmatpush1.msra.mxu0 0.0
        %732 = vmatprep.subr.mxu0 0.0
        %733 = vmatpush1.msra.mxu0 0.0
        %734 = vmatprep.subr.mxu0 0.0
        %735 = vmatpush1.msra.mxu0 0.0
        %736 = vmatprep.subr.mxu0 0.0
        %737 = vmatpush1.msra.mxu0 0.0
        %738 = vmatprep.subr.mxu0 0.0
        %739 = vmatpush1.msra.mxu0 0.0
        %740 = vmatprep.subr.mxu0 0.0
        %741 = vmatpush1.msra.mxu0 0.0
        %742 = vmatprep.subr.mxu0 0.0
        %743 = vmatpush1.msra.mxu0 0.0
        %744 = vmatprep.subr.mxu0 0.0
        %745 = vmatpush1.msra.mxu0 0.0
        %746 = vmatprep.subr.mxu0 0.0
        %747 = vmatpush1.msra.mxu0 0.0
        %748 = vmatprep.subr.mxu0 0.0
        %749 = vmatpush1.msra.mxu0 0.0
        %750 = vmatprep.subr.mxu0 0.0
        %751 = vmatpush1.msra.mxu0 0.0
        %752 = vmatprep.mubr.f32.mxu0 0.0
        %753 = vmatmul.mubr.f32.gmra.mrb[0].mxu0 %v686
        %v754 = vpop.f32.mrb[0].mxu0
        %v755 = vadd.f32 0.0, %v754
        %v756 = vpop.f32.mrb[0].mxu0
        %757 = vdwg.mxu0
        %758 = vrot.lane.b32.xlu0 %v421, 96
        %v759 = vpop.permute.xlu0 %758
        %760 = vrot.lane.b32.xlu0 %v418, 96
        %v761 = vpop.permute.xlu0 %760
        %v762 = vsel %vm422, %v759, 0
        %v764 = vsel %vm422, %v761, 0
        %766 = vmatprep.subr.mxu0 0.0
        %767 = vmatpush1.xpose.msra.mxu0 %v764
        %768 = vmatprep.subr.mxu0 0.0
        %769 = vmatpush1.xpose.msra.mxu0 0.0
        %770 = vmatprep.subr.mxu0 0.0
        %771 = vmatpush1.xpose.msra.mxu0 0.0
        %772 = vmatprep.subr.mxu0 0.0
        %773 = vmatpush1.xpose.msra.mxu0 0.0
        %774 = vmatprep.subr.mxu0 0.0
        %775 = vmatpush1.xpose.msra.mxu0 0.0
        %776 = vmatprep.subr.mxu0 0.0
        %777 = vmatpush1.xpose.msra.mxu0 0.0
        %778 = vmatprep.subr.mxu0 0.0
        %779 = vmatpush1.xpose.msra.mxu0 0.0
        %780 = vmatprep.subr.mxu0 0.0
        %781 = vmatpush1.xpose.msra.mxu0 0.0
        %782 = vmatprep.subr.mxu0 0.0
        %783 = vmatpush1.xpose.msra.mxu0 0.0
        %784 = vmatprep.subr.mxu0 0.0
        %785 = vmatpush1.xpose.msra.mxu0 0.0
        %786 = vmatprep.subr.mxu0 0.0
        %787 = vmatpush1.xpose.msra.mxu0 0.0
        %788 = vmatprep.subr.mxu0 0.0
        %789 = vmatpush1.xpose.msra.mxu0 0.0
        %790 = vmatprep.subr.mxu0 0.0
        %791 = vmatpush1.xpose.msra.mxu0 0.0
        %792 = vmatprep.subr.mxu0 0.0
        %793 = vmatpush1.xpose.msra.mxu0 0.0
        %794 = vmatprep.subr.mxu0 0.0
        %795 = vmatpush1.xpose.msra.mxu0 0.0
        %796 = vmatprep.subr.mxu0 0.0
        %797 = vmatpush1.xpose.msra.mxu0 0.0
        %798 = vmatprep.subr.mxu0 0.0
        %799 = vmatpush1.xpose.msra.mxu0 0.0
        %800 = vmatprep.subr.mxu0 0.0
        %801 = vmatpush1.xpose.msra.mxu0 0.0
        %802 = vmatprep.subr.mxu0 0.0
        %803 = vmatpush1.xpose.msra.mxu0 0.0
        %804 = vmatprep.subr.mxu0 0.0
        %805 = vmatpush1.xpose.msra.mxu0 0.0
        %806 = vmatprep.subr.mxu0 0.0
        %807 = vmatpush1.xpose.msra.mxu0 0.0
        %808 = vmatprep.subr.mxu0 0.0
        %809 = vmatpush1.xpose.msra.mxu0 0.0
        %810 = vmatprep.subr.mxu0 0.0
        %811 = vmatpush1.xpose.msra.mxu0 0.0
        %812 = vmatprep.subr.mxu0 0.0
        %813 = vmatpush1.xpose.msra.mxu0 0.0
        %814 = vmatprep.subr.mxu0 0.0
        %815 = vmatpush1.xpose.msra.mxu0 0.0
        %816 = vmatprep.subr.mxu0 0.0
        %817 = vmatpush1.xpose.msra.mxu0 0.0
        %818 = vmatprep.subr.mxu0 0.0
        %819 = vmatpush1.xpose.msra.mxu0 0.0
        %820 = vmatprep.subr.mxu0 0.0
        %821 = vmatpush1.xpose.msra.mxu0 0.0
        %822 = vmatprep.subr.mxu0 0.0
        %823 = vmatpush1.xpose.msra.mxu0 0.0
        %824 = vmatprep.subr.mxu0 0.0
        %825 = vmatpush1.xpose.msra.mxu0 0.0
        %826 = vmatprep.subr.mxu0 0.0
        %827 = vmatpush1.xpose.msra.mxu0 0.0
        %828 = vmatprep.subr.mxu0 0.0
        %829 = vmatpush1.xpose.msra.mxu0 0.0
        %830 = vmatprep.mubr.f32.mxu0 0.0
        %831 = vmatmul.mubr.f32.gmra.mrb[0].mxu0 %v762
        %v832 = vpop.f32.mrb[0].mxu0
        %v833 = vadd.f32 0.0, %v832
        %v834 = vpop.f32.mrb[0].mxu0
        %835 = vdwg.mxu0
        %v836 = vsel %vm499, %v833, -inf
        %837 = vmax.xlane.f32.xlu0 %v836
        %v838 = vpop.xlane.xlu0 %837
        %v839 = vsub.f32 %v833, %v838
        %v840 = vmul.f32 %v839, 1.442695
        %v841 = vpow.pop %v840
        %v842 = vsel %vm499, %v841, 0.0
        %843 = vadd.xlane.f32.xlu0 %v842
        %v844 = vpop.xlane.xlu0 %843
        %v845 = vrcp.pop %v844
        %v846 = vmul.f32 %v844, %v845
        %v847 = vsub.f32 2.0, %v846
        %v848 = vmul.f32 %v845, %v847
        %v849 = vmul.f32 %v841, %v848
        %850 = vrot.lane.b32.xlu0 %v418, 32
        %v851 = vpop.permute.xlu0 %850
        %v854 = vsel %vm499, %v849, 0
        %856 = vmatprep.subr.mxu0 0.0
        %857 = vmatpush1.msra.mxu0 %v851
        %858 = vmatprep.subr.mxu0 0.0
        %859 = vmatpush1.msra.mxu0 0.0
        %860 = vmatprep.subr.mxu0 0.0
        %861 = vmatpush1.msra.mxu0 0.0
        %862 = vmatprep.subr.mxu0 0.0
        %863 = vmatpush1.msra.mxu0 0.0
        %864 = vmatprep.subr.mxu0 0.0
        %865 = vmatpush1.msra.mxu0 0.0
        %866 = vmatprep.subr.mxu0 0.0
        %867 = vmatpush1.msra.mxu0 0.0
        %868 = vmatprep.subr.mxu0 0.0
        %869 = vmatpush1.msra.mxu0 0.0
        %870 = vmatprep.subr.mxu0 0.0
        %871 = vmatpush1.msra.mxu0 0.0
        %872 = vmatprep.subr.mxu0 0.0
        %873 = vmatpush1.msra.mxu0 0.0
        %874 = vmatprep.subr.mxu0 0.0
        %875 = vmatpush1.msra.mxu0 0.0
        %876 = vmatprep.subr.mxu0 0.0
        %877 = vmatpush1.msra.mxu0 0.0
        %878 = vmatprep.subr.mxu0 0.0
        %879 = vmatpush1.msra.mxu0 0.0
        %880 = vmatprep.subr.mxu0 0.0
        %881 = vmatpush1.msra.mxu0 0.0
        %882 = vmatprep.subr.mxu0 0.0
        %883 = vmatpush1.msra.mxu0 0.0
        %884 = vmatprep.subr.mxu0 0.0
        %885 = vmatpush1.msra.mxu0 0.0
        %886 = vmatprep.subr.mxu0 0.0
        %887 = vmatpush1.msra.mxu0 0.0
        %888 = vmatprep.subr.mxu0 0.0
        %889 = vmatpush1.msra.mxu0 0.0
        %890 = vmatprep.subr.mxu0 0.0
        %891 = vmatpush1.msra.mxu0 0.0
        %892 = vmatprep.subr.mxu0 0.0
        %893 = vmatpush1.msra.mxu0 0.0
        %894 = vmatprep.subr.mxu0 0.0
        %895 = vmatpush1.msra.mxu0 0.0
        %896 = vmatprep.subr.mxu0 0.0
        %897 = vmatpush1.msra.mxu0 0.0
        %898 = vmatprep.subr.mxu0 0.0
        %899 = vmatpush1.msra.mxu0 0.0
        %900 = vmatprep.subr.mxu0 0.0
        %901 = vmatpush1.msra.mxu0 0.0
        %902 = vmatprep.subr.mxu0 0.0
        %903 = vmatpush1.msra.mxu0 0.0
        %904 = vmatprep.subr.mxu0 0.0
        %905 = vmatpush1.msra.mxu0 0.0
        %906 = vmatprep.subr.mxu0 0.0
        %907 = vmatpush1.msra.mxu0 0.0
        %908 = vmatprep.subr.mxu0 0.0
        %909 = vmatpush1.msra.mxu0 0.0
        %910 = vmatprep.subr.mxu0 0.0
        %911 = vmatpush1.msra.mxu0 0.0
        %912 = vmatprep.subr.mxu0 0.0
        %913 = vmatpush1.msra.mxu0 0.0
        %914 = vmatprep.subr.mxu0 0.0
        %915 = vmatpush1.msra.mxu0 0.0
        %916 = vmatprep.subr.mxu0 0.0
        %917 = vmatpush1.msra.mxu0 0.0
        %918 = vmatprep.subr.mxu0 0.0
        %919 = vmatpush1.msra.mxu0 0.0
        %920 = vmatprep.mubr.f32.mxu0 0.0
        %921 = vmatmul.mubr.f32.gmra.mrb[0].mxu0 %v854
        %v922 = vpop.f32.mrb[0].mxu0
        %v923 = vadd.f32 0.0, %v922
        %v924 = vpop.f32.mrb[0].mxu0
        %925 = vdwg.mxu0
        %926 = vrot.lane.b32.xlu0 %v421, 80
        %v927 = vpop.permute.xlu0 %926
        %928 = vrot.lane.b32.xlu0 %v418, 80
        %v929 = vpop.permute.xlu0 %928
        %v930 = vsel %vm422, %v927, 0
        %v932 = vsel %vm422, %v929, 0
        %934 = vmatprep.subr.mxu0 0.0
        %935 = vmatpush1.xpose.msra.mxu0 %v932
        %936 = vmatprep.subr.mxu0 0.0
        %937 = vmatpush1.xpose.msra.mxu0 0.0
        %938 = vmatprep.subr.mxu0 0.0
        %939 = vmatpush1.xpose.msra.mxu0 0.0
        %940 = vmatprep.subr.mxu0 0.0
        %941 = vmatpush1.xpose.msra.mxu0 0.0
        %942 = vmatprep.subr.mxu0 0.0
        %943 = vmatpush1.xpose.msra.mxu0 0.0
        %944 = vmatprep.subr.mxu0 0.0
        %945 = vmatpush1.xpose.msra.mxu0 0.0
        %946 = vmatprep.subr.mxu0 0.0
        %947 = vmatpush1.xpose.msra.mxu0 0.0
        %948 = vmatprep.subr.mxu0 0.0
        %949 = vmatpush1.xpose.msra.mxu0 0.0
        %950 = vmatprep.subr.mxu0 0.0
        %951 = vmatpush1.xpose.msra.mxu0 0.0
        %952 = vmatprep.subr.mxu0 0.0
        %953 = vmatpush1.xpose.msra.mxu0 0.0
        %954 = vmatprep.subr.mxu0 0.0
        %955 = vmatpush1.xpose.msra.mxu0 0.0
        %956 = vmatprep.subr.mxu0 0.0
        %957 = vmatpush1.xpose.msra.mxu0 0.0
        %958 = vmatprep.subr.mxu0 0.0
        %959 = vmatpush1.xpose.msra.mxu0 0.0
        %960 = vmatprep.subr.mxu0 0.0
        %961 = vmatpush1.xpose.msra.mxu0 0.0
        %962 = vmatprep.subr.mxu0 0.0
        %963 = vmatpush1.xpose.msra.mxu0 0.0
        %964 = vmatprep.subr.mxu0 0.0
        %965 = vmatpush1.xpose.msra.mxu0 0.0
        %966 = vmatprep.subr.mxu0 0.0
        %967 = vmatpush1.xpose.msra.mxu0 0.0
        %968 = vmatprep.subr.mxu0 0.0
        %969 = vmatpush1.xpose.msra.mxu0 0.0
        %970 = vmatprep.subr.mxu0 0.0
        %971 = vmatpush1.xpose.msra.mxu0 0.0
        %972 = vmatprep.subr.mxu0 0.0
        %973 = vmatpush1.xpose.msra.mxu0 0.0
        %974 = vmatprep.subr.mxu0 0.0
        %975 = vmatpush1.xpose.msra.mxu0 0.0
        %976 = vmatprep.subr.mxu0 0.0
        %977 = vmatpush1.xpose.msra.mxu0 0.0
        %978 = vmatprep.subr.mxu0 0.0
        %979 = vmatpush1.xpose.msra.mxu0 0.0
        %980 = vmatprep.subr.mxu0 0.0
        %981 = vmatpush1.xpose.msra.mxu0 0.0
        %982 = vmatprep.subr.mxu0 0.0
        %983 = vmatpush1.xpose.msra.mxu0 0.0
        %984 = vmatprep.subr.mxu0 0.0
        %985 = vmatpush1.xpose.msra.mxu0 0.0
        %986 = vmatprep.subr.mxu0 0.0
        %987 = vmatpush1.xpose.msra.mxu0 0.0
        %988 = vmatprep.subr.mxu0 0.0
        %989 = vmatpush1.xpose.msra.mxu0 0.0
        %990 = vmatprep.subr.mxu0 0.0
        %991 = vmatpush1.xpose.msra.mxu0 0.0
        %992 = vmatprep.subr.mxu0 0.0
        %993 = vmatpush1.xpose.msra.mxu0 0.0
        %994 = vmatprep.subr.mxu0 0.0
        %995 = vmatpush1.xpose.msra.mxu0 0.0
        %996 = vmatprep.subr.mxu0 0.0
        %997 = vmatpush1.xpose.msra.mxu0 0.0
        %998 = vmatprep.mubr.f32.mxu0 0.0
        %999 = vmatmul.mubr.f32.gmra.mrb[0].mxu0 %v930
        %v1000 = vpop.f32.mrb[0].mxu0
        %v1001 = vadd.f32 0.0, %v1000
        %v1002 = vpop.f32.mrb[0].mxu0
        %1003 = vdwg.mxu0
        %v1004 = vsel %vm499, %v1001, -inf
        %1005 = vmax.xlane.f32.xlu0 %v1004
        %v1006 = vpop.xlane.xlu0 %1005
        %v1007 = vsub.f32 %v1001, %v1006
        %v1008 = vmul.f32 %v1007, 1.442695
        %v1009 = vpow.pop %v1008
        %v1010 = vsel %vm499, %v1009, 0.0
        %1011 = vadd.xlane.f32.xlu0 %v1010
        %v1012 = vpop.xlane.xlu0 %1011
        %v1013 = vrcp.pop %v1012
        %v1014 = vmul.f32 %v1012, %v1013
        %v1015 = vsub.f32 2.0, %v1014
        %v1016 = vmul.f32 %v1013, %v1015
        %v1017 = vmul.f32 %v1009, %v1016
        %1018 = vrot.lane.b32.xlu0 %v418, 16
        %v1019 = vpop.permute.xlu0 %1018
        %v1022 = vsel %vm499, %v1017, 0
        %1024 = vmatprep.subr.mxu0 0.0
        %1025 = vmatpush1.msra.mxu0 %v1019
        %1026 = vmatprep.subr.mxu0 0.0
        %1027 = vmatpush1.msra.mxu0 0.0
        %1028 = vmatprep.subr.mxu0 0.0
        %1029 = vmatpush1.msra.mxu0 0.0
        %1030 = vmatprep.subr.mxu0 0.0
        %1031 = vmatpush1.msra.mxu0 0.0
        %1032 = vmatprep.subr.mxu0 0.0
        %1033 = vmatpush1.msra.mxu0 0.0
        %1034 = vmatprep.subr.mxu0 0.0
        %1035 = vmatpush1.msra.mxu0 0.0
        %1036 = vmatprep.subr.mxu0 0.0
        %1037 = vmatpush1.msra.mxu0 0.0
        %1038 = vmatprep.subr.mxu0 0.0
        %1039 = vmatpush1.msra.mxu0 0.0
        %1040 = vmatprep.subr.mxu0 0.0
        %1041 = vmatpush1.msra.mxu0 0.0
        %1042 = vmatprep.subr.mxu0 0.0
        %1043 = vmatpush1.msra.mxu0 0.0
        %1044 = vmatprep.subr.mxu0 0.0
        %1045 = vmatpush1.msra.mxu0 0.0
        %1046 = vmatprep.subr.mxu0 0.0
        %1047 = vmatpush1.msra.mxu0 0.0
        %1048 = vmatprep.subr.mxu0 0.0
        %1049 = vmatpush1.msra.mxu0 0.0
        %1050 = vmatprep.subr.mxu0 0.0
        %1051 = vmatpush1.msra.mxu0 0.0
        %1052 = vmatprep.subr.mxu0 0.0
        %1053 = vmatpush1.msra.mxu0 0.0
        %1054 = vmatprep.subr.mxu0 0.0
        %1055 = vmatpush1.msra.mxu0 0.0
        %1056 = vmatprep.subr.mxu0 0.0
        %1057 = vmatpush1.msra.mxu0 0.0
        %1058 = vmatprep.subr.mxu0 0.0
        %1059 = vmatpush1.msra.mxu0 0.0
        %1060 = vmatprep.subr.mxu0 0.0
        %1061 = vmatpush1.msra.mxu0 0.0
        %1062 = vmatprep.subr.mxu0 0.0
        %1063 = vmatpush1.msra.mxu0 0.0
        %1064 = vmatprep.subr.mxu0 0.0
        %1065 = vmatpush1.msra.mxu0 0.0
        %1066 = vmatprep.subr.mxu0 0.0
        %1067 = vmatpush1.msra.mxu0 0.0
        %1068 = vmatprep.subr.mxu0 0.0
        %1069 = vmatpush1.msra.mxu0 0.0
        %1070 = vmatprep.subr.mxu0 0.0
        %1071 = vmatpush1.msra.mxu0 0.0
        %1072 = vmatprep.subr.mxu0 0.0
        %1073 = vmatpush1.msra.mxu0 0.0
        %1074 = vmatprep.subr.mxu0 0.0
        %1075 = vmatpush1.msra.mxu0 0.0
        %1076 = vmatprep.subr.mxu0 0.0
        %1077 = vmatpush1.msra.mxu0 0.0
        %1078 = vmatprep.subr.mxu0 0.0
        %1079 = vmatpush1.msra.mxu0 0.0
        %1080 = vmatprep.subr.mxu0 0.0
        %1081 = vmatpush1.msra.mxu0 0.0
        %1082 = vmatprep.subr.mxu0 0.0
        %1083 = vmatpush1.msra.mxu0 0.0
        %1084 = vmatprep.subr.mxu0 0.0
        %1085 = vmatpush1.msra.mxu0 0.0
        %1086 = vmatprep.subr.mxu0 0.0
        %1087 = vmatpush1.msra.mxu0 0.0
        %1088 = vmatprep.mubr.f32.mxu0 0.0
        %1089 = vmatmul.mubr.f32.gmra.mrb[0].mxu0 %v1022
        %v1090 = vpop.f32.mrb[0].mxu0
        %v1091 = vadd.f32 0.0, %v1090
        %v1092 = vpop.f32.mrb[0].mxu0
        %1093 = vdwg.mxu0
        %1095 = vrot.lane.b32.xlu0 %v755, 16
        %v1096 = vpop.permute.xlu0 %1095
        %1099 = vrot.lane.b32.xlu0 %v923, 32
        %v1100 = vpop.permute.xlu0 %1099
        %1103 = vrot.lane.b32.xlu0 %v1091, 48
        %v1104 = vpop.permute.xlu0 %1103
        %v1106 = vsel %vm422, %v587, %v1096
        %v1107 = vsel %vm270, %v1106, %v1100
        %vm1108 = vcmask 392192
        %v1109 = vsel %vm1108, %v1107, %v1104
        %v1110 = vld [vmem:[%s4] sm:$0xff]
        %v1111 = vld [vmem:[%s4 + $0x8] sm:$0xff]
        %v1112 = vld [vmem:[%s4 + $0x10] sm:$0xff]
        %v1113 = vld [vmem:[%s4 + $0x18] sm:$0xff]
        %v1114 = vld [vmem:[%s4 + $0x20] sm:$0xff]
        %v1115 = vld [vmem:[%s4 + $0x28] sm:$0xff]
        %v1116 = vld [vmem:[%s4 + $0x30] sm:$0xff]
        %v1117 = vld [vmem:[%s4 + $0x38] sm:$0xff]
        %v1118 = vld [vmem:[%s5] sm:$0x1]
        %v1120 = vlaneseq
        %v1121 = vshrl.u32 %v1120, 7
        %v1122 = vsub.s32 0, %v1121
        %v1123 = vrot.slane %v1118, %v1122
        %vm1125 = vcmask 523264
        %v1127 = vsel %vm1125, %v1109, 0
        %1129 = vmatprep.subr.mxu0 0.0
        %1130 = vmatpush1.msra.mxu0 %v1110
        %1131 = vmatprep.subr.mxu0 0.0
        %1132 = vmatpush1.msra.mxu0 %v1111
        %1133 = vmatprep.subr.mxu0 0.0
        %1134 = vmatpush1.msra.mxu0 %v1112
        %1135 = vmatprep.subr.mxu0 0.0
        %1136 = vmatpush1.msra.mxu0 %v1113
        %1137 = vmatprep.subr.mxu0 0.0
        %1138 = vmatpush1.msra.mxu0 %v1114
        %1139 = vmatprep.subr.mxu0 0.0
        %1140 = vmatpush1.msra.mxu0 %v1115
        %1141 = vmatprep.subr.mxu0 0.0
        %1142 = vmatpush1.msra.mxu0 %v1116
        %1143 = vmatprep.subr.mxu0 0.0
        %1144 = vmatpush1.msra.mxu0 %v1117
        %1145 = vmatprep.subr.mxu0 0.0
        %1146 = vmatpush1.msra.mxu0 0.0
        %1147 = vmatprep.subr.mxu0 0.0
        %1148 = vmatpush1.msra.mxu0 0.0
        %1149 = vmatprep.subr.mxu0 0.0
        %1150 = vmatpush1.msra.mxu0 0.0
        %1151 = vmatprep.subr.mxu0 0.0
        %1152 = vmatpush1.msra.mxu0 0.0
        %1153 = vmatprep.subr.mxu0 0.0
        %1154 = vmatpush1.msra.mxu0 0.0
        %1155 = vmatprep.subr.mxu0 0.0
        %1156 = vmatpush1.msra.mxu0 0.0
        %1157 = vmatprep.subr.mxu0 0.0
        %1158 = vmatpush1.msra.mxu0 0.0
        %1159 = vmatprep.subr.mxu0 0.0
        %1160 = vmatpush1.msra.mxu0 0.0
        %1161 = vmatprep.subr.mxu0 0.0
        %1162 = vmatpush1.msra.mxu0 0.0
        %1163 = vmatprep.subr.mxu0 0.0
        %1164 = vmatpush1.msra.mxu0 0.0
        %1165 = vmatprep.subr.mxu0 0.0
        %1166 = vmatpush1.msra.mxu0 0.0
        %1167 = vmatprep.subr.mxu0 0.0
        %1168 = vmatpush1.msra.mxu0 0.0
        %1169 = vmatprep.subr.mxu0 0.0
        %1170 = vmatpush1.msra.mxu0 0.0
        %1171 = vmatprep.subr.mxu0 0.0
        %1172 = vmatpush1.msra.mxu0 0.0
        %1173 = vmatprep.subr.mxu0 0.0
        %1174 = vmatpush1.msra.mxu0 0.0
        %1175 = vmatprep.subr.mxu0 0.0
        %1176 = vmatpush1.msra.mxu0 0.0
        %1177 = vmatprep.subr.mxu0 0.0
        %1178 = vmatpush1.msra.mxu0 0.0
        %1179 = vmatprep.subr.mxu0 0.0
        %1180 = vmatpush1.msra.mxu0 0.0
        %1181 = vmatprep.subr.mxu0 0.0
        %1182 = vmatpush1.msra.mxu0 0.0
        %1183 = vmatprep.subr.mxu0 0.0
        %1184 = vmatpush1.msra.mxu0 0.0
        %1185 = vmatprep.subr.mxu0 0.0
        %1186 = vmatpush1.msra.mxu0 0.0
        %1187 = vmatprep.subr.mxu0 0.0
        %1188 = vmatpush1.msra.mxu0 0.0
        %1189 = vmatprep.subr.mxu0 0.0
        %1190 = vmatpush1.msra.mxu0 0.0
        %1191 = vmatprep.subr.mxu0 0.0
        %1192 = vmatpush1.msra.mxu0 0.0
        %1193 = vmatprep.mubr.f32.mxu0 0.0
        %1194 = vmatmul.mubr.f32.gmra.mrb[0].mxu0 %v1127
        %v1195 = vpop.f32.mrb[0].mxu0
        %v1196 = vadd.f32 %v1123, %v1195
        %v1197 = vpop.f32.mrb[0].mxu0
        %1198 = vdwg.mxu0
        %1199 = vst.msk [vmem:[%s255] sm:$0xff] %vm270, %v1196
        %s1200 = sand.u32 %s164, 1
        %s1201 = scalar_lea.sflag [#allocation3], %s1200
        %s1202 = sand.u32 %s164, 1
        %s1203 = smul.addr %s1202, 8
        %s1204 = scalar_lea.vmem [#allocation2], %s1203
        // Predicated region
        $region45: #{tpu_custom_call.1} parent=43 // pred_check
          %p1205 = pneg %p174
        $region46: #{tpu_custom_call.1} parent=43 // pred_check_branch
          %1207 = sbr.rel (%p1205) target = $region48
        $region47: #{tpu_custom_call.1} parent=43 // pred_region
          %s1209 = ssub.s32 128, 128
          %1210 = vsyncadd %s1201, %s1209
          %s1211 = smul.addr %s20, 128
          %s1212 = scalar_lea.hbm %s6, %s1211
          %s1214 = sshll.u32 %s1204, 4
          %s1215 = int_to_ptr.vmem [resolvable:$true] %s1214
          %1217 = dma.vmem_to_hbm [thread:$0]  %s1215, 128, %s1212, %s1201
        $region48: #{tpu_custom_call.1} parent=43 // pred_fallthru
          _
      $region44: #{tpu_custom_call.1} parent=5 // pred_fallthru
        _
      %p1218 = scmp.le.s32.totalorder 2, %s15
      // Predicated region
      $region49: #{tpu_custom_call.1} parent=5 // pred_check
        %p1219 = pneg %p1218
      $region50: #{tpu_custom_call.1} parent=5 // pred_check_branch
        %1221 = sbr.rel (%p1219) target = $region52
      $region51: #{tpu_custom_call.1} parent=5 // pred_region
        %s1222 = ssub.s32 %s15, 2
        // Predicated region
        $region53: #{tpu_custom_call.1} parent=51 // pred_check
          %p1223 = pneg %p180
        $region54: #{tpu_custom_call.1} parent=51 // pred_check_branch
          %1225 = sbr.rel (%p1223) target = $region56
        $region55: #{tpu_custom_call.1} parent=51 // pred_region
          %s1226 = sand.u32 %s165, 1
          %s1227 = scalar_lea.sflag [#allocation3], %s1226
          %s1228 = sand.u32 %s165, 1
          %s1229 = smul.addr %s1228, 8
          %s1230 = scalar_lea.vmem [#allocation2], %s1229
          %1231 = dma.done %s1227, 128
        $region56: #{tpu_custom_call.1} parent=51 // pred_fallthru
          _
      $region52: #{tpu_custom_call.1} parent=5 // pred_fallthru
        _
    $region6: #{tpu_custom_call.1} parent=1 // loop_footer
      %s19 = sadd.s32 1, %s15
    $region7: #{tpu_custom_call.1} parent=1 // loop_footer_branch
      %14 = sbr.rel target = $region3
    $region8: #{tpu_custom_call.1} parent=1 // loop_exit
      _
    %1232 = vsyncpa [#allocation3], 1
    %s1233 = scalar_lea.sflag [#allocation3], 1
    %1234 = vsyncpa %s1233, 1

</llo_original>
